<compile_context>
chip_gen: v5e
topology: v5e:2x2
jax: 0.10.0
libtpu: 0.0.40
codegen_flags: <defaults>
</compile_context>

<pallas_src>
import math
import functools

import jax
import jax.numpy as jnp
from jax import lax
from jax.experimental import pallas as pl
from jax.experimental.pallas import tpu as pltpu


def _attention_kernel(x_ref, wkqv_ref, bkqv_ref, wp_ref, bp_ref, o_ref, y_slab,
                      *, n_head, batch, seq):
    """Whole-problem causal self-attention for one grid step.

    x_ref    : (B*T, C)  bf16  flattened tokens
    wkqv_ref : (C, 3C)   bf16  fused QKV weight, head-major [K | Q | V] blocks,
                               Q block pre-scaled by 1/sqrt(hs)
    bkqv_ref : (1, 3C)   f32   fused QKV bias (same layout / scaling)
    wp_ref   : (C, C)    bf16  output projection weight
    bp_ref   : (1, C)    f32   output projection bias
    o_ref    : (B*T, C)  f32   output
    y_slab   : (B*T, C)  f32   VMEM scratch: per-head attention outputs
    """
    C = x_ref.shape[1]
    hs = C // n_head

    # ---- fused QKV projection: one (B*T, C) @ (C, 3C) MXU matmul -----------
    kqv = jnp.dot(x_ref[...], wkqv_ref[...], preferred_element_type=jnp.float32)
    kqv = kqv + bkqv_ref[...]                       # (B*T, 3C) f32

    k = kqv[:, :C]                                  # head-major hs-wide blocks
    q = kqv[:, C:2 * C]                             # already scaled by 1/sqrt(hs)
    v = kqv[:, 2 * C:]

    # Causal mask computed once, reused for every (batch, head) pair.
    row = lax.broadcasted_iota(jnp.int32, (seq, seq), 0)
    col = lax.broadcasted_iota(jnp.int32, (seq, seq), 1)
    causal = col <= row
    neg = jnp.float32(-1e30)                        # finite: safe if fully masked

    for b in range(batch):                          # static unroll (B tiny)
        r0 = b * seq
        for h in range(n_head):                     # static unroll (n_head small)
            c0 = h * hs
            qh = q[r0:r0 + seq, c0:c0 + hs].astype(jnp.bfloat16)   # (T, hs)
            kh = k[r0:r0 + seq, c0:c0 + hs].astype(jnp.bfloat16)   # (T, hs)
            vh = v[r0:r0 + seq, c0:c0 + hs].astype(jnp.bfloat16)   # (T, hs)

            # s = qh @ kh^T with no explicit transpose (contract on hs).
            s = lax.dot_general(qh, kh, (((1,), (1,)), ((), ())),
                                preferred_element_type=jnp.float32)  # (T, T)
            s = jnp.where(causal, s, neg)

            m = jnp.max(s, axis=-1, keepdims=True)
            p = jnp.exp(s - m)                                       # unnormalized
            denom = jnp.sum(p, axis=-1, keepdims=True)               # (T, 1)

            yh = jnp.dot(p.astype(jnp.bfloat16), vh,
                         preferred_element_type=jnp.float32)          # (T, hs)
            # Normalize after the PV matmul: reciprocal runs on the EUP slot.
            yh = yh * pl.reciprocal(denom, approx=True)

            # Lane-offset store into the slab -> no concatenate, no XLU work.
            y_slab[r0:r0 + seq, c0:c0 + hs] = yh

    # ---- single output projection with K = C (full MXU fill) ---------------
    # attn_drop / resid_drop are identity in eval mode.
    y = jnp.dot(y_slab[...].astype(jnp.bfloat16), wp_ref[...],
                preferred_element_type=jnp.float32)                   # (B*T, C)
    o_ref[...] = (y + bp_ref[...]).astype(o_ref.dtype)


def causal_self_attention(x, w_kqv, b_kqv, w_proj, b_proj, *, n_head):
    """x: (B, T, C) f32.  Weights are stored (in, out), i.e. transposed vs.
    torch.nn.Linear's (out, in).  The fused kqv layout matches this module:
    the output is viewed as (B, T, nh, 3*hs) and the last axis is split into
    [k | q | v], i.e. columns are per-head interleaved."""
    B, T, C = x.shape
    hs = C // n_head
    scale = 1.0 / math.sqrt(hs)

    # One-time wrapper-side column permutation to head-major [K | Q | V]
    # blocks, with 1/sqrt(hs) folded into the Q columns (weight + bias).
    cols = jnp.arange(3 * C).reshape(n_head, 3, hs)
    perm = jnp.concatenate([cols[:, 0].reshape(-1),
                            cols[:, 1].reshape(-1),
                            cols[:, 2].reshape(-1)])
    col_scale = jnp.concatenate([jnp.ones((C,), jnp.float32),
                                 jnp.full((C,), scale, jnp.float32),
                                 jnp.ones((C,), jnp.float32)])
    wkqv = (w_kqv[:, perm] * col_scale[None, :]).astype(jnp.bfloat16)  # (C, 3C)
    bkqv = (b_kqv[perm] * col_scale).reshape(1, 3 * C).astype(jnp.float32)
    wp = w_proj.astype(jnp.bfloat16)                                   # (C, C)
    bp = b_proj.reshape(1, C).astype(jnp.float32)                      # (1, C)
    xb = x.reshape(B * T, C).astype(jnp.bfloat16)                      # flatten B*T

    flops = (2 * B * T * C * 3 * C                 # fused QKV projection
             + 2 * 2 * B * n_head * T * T * hs     # QK^T + PV
             + 2 * B * T * C * C)                  # output projection
    transcendentals = B * n_head * T * (T + 1)     # exp + reciprocal
    bytes_accessed = sum(int(a.size) * a.dtype.itemsize
                         for a in (xb, wkqv, bkqv, wp, bp)) + B * T * C * 4

    kernel = functools.partial(_attention_kernel,
                               n_head=n_head, batch=B, seq=T)
    const2 = lambda i: (0, 0)
    out = pl.pallas_call(
        kernel,
        out_shape=jax.ShapeDtypeStruct((B * T, C), jnp.float32),
        grid_spec=pltpu.PrefetchScalarGridSpec(
            num_scalar_prefetch=0,
            grid=(1,),                              # whole problem in one step
            in_specs=[
                pl.BlockSpec((B * T, C), const2),       # x, flattened tokens
                pl.BlockSpec((C, 3 * C), const2),       # fused W_kqv
                pl.BlockSpec((1, 3 * C), const2),       # fused b_kqv
                pl.BlockSpec((C, C), const2),           # W_proj (flat, K=C)
                pl.BlockSpec((1, C), const2),           # b_proj
            ],
            out_specs=pl.BlockSpec((B * T, C), const2),
            scratch_shapes=[pltpu.VMEM((B * T, C), jnp.float32)],
        ),
        compiler_params=pltpu.CompilerParams(
            dimension_semantics=("arbitrary",),
            vmem_limit_bytes=32 * 1024 * 1024),
        cost_estimate=pl.CostEstimate(flops=flops,
                                      transcendentals=transcendentals,
                                      bytes_accessed=bytes_accessed),
    )(xb, wkqv, bkqv, wp, bp)
    return out.reshape(B, T, C)


def reference_jax(x, w_kqv, b_kqv, w_proj, b_proj, n_head):
    """Pure-JAX mirror of the PyTorch forward (eval mode), f32 throughout."""
    B, T, C = x.shape
    hs = C // n_head
    kqv = x @ w_kqv + b_kqv                                  # (B, T, 3C)
    kqv = kqv.reshape(B, T, n_head, 3 * hs)
    k, q, v = kqv[..., :hs], kqv[..., hs:2 * hs], kqv[..., 2 * hs:]
    k = jnp.transpose(k, (0, 2, 1, 3))                       # (B, nh, T, hs)
    q = jnp.transpose(q, (0, 2, 1, 3))
    v = jnp.transpose(v, (0, 2, 1, 3))
    att = jnp.einsum('bhtd,bhsd->bhts', q, k) / math.sqrt(hs)
    mask = jnp.tril(jnp.ones((T, T), dtype=bool))
    att = jnp.where(mask[None, None], att, -jnp.inf)
    att = jax.nn.softmax(att, axis=-1)
    y = jnp.einsum('bhts,bhsd->bhtd', att, v)
    y = jnp.transpose(y, (0, 2, 1, 3)).reshape(B, T, C)
    return y @ w_proj + b_proj


if __name__ == "__main__":
    # Small config consistent with the module: n_embd=32, n_head=4, block_size=T=8.
    # NB: perf conclusions should be drawn at the real minGPT shape
    # (T>=1024, hs=64, C=768); this toy size is overhead-dominated.
    B, T, C, n_head = 2, 8, 32, 4

    key = jax.random.PRNGKey(0)
    kx, k1, k2, k3, k4 = jax.random.split(key, 5)

    x = jax.random.normal(kx, (B, T, C), dtype=jnp.float32)
    # (in, out) layout, i.e. transposed relative to torch.nn.Linear's (out, in).
    w_kqv = 0.02 * jax.random.normal(k1, (C, 3 * C), dtype=jnp.float32)
    b_kqv = 0.01 * jax.random.normal(k2, (3 * C,), dtype=jnp.float32)
    w_proj = 0.02 * jax.random.normal(k3, (C, C), dtype=jnp.float32)
    b_proj = 0.01 * jax.random.normal(k4, (C,), dtype=jnp.float32)

    out = causal_self_attention(x, w_kqv, b_kqv, w_proj, b_proj, n_head=n_head)
    out = jax.block_until_ready(out)

    ref = reference_jax(x, w_kqv, b_kqv, w_proj, b_proj, n_head)
    assert out.shape == (B, T, C)
    max_err = float(jnp.max(jnp.abs(out - ref)))
    # bf16 matmul operands + approx reciprocal -> modest tolerance vs f32 ref.
    assert jnp.allclose(out, ref, rtol=3e-2, atol=3e-3), (
        f"mismatch vs reference (max abs err={max_err})")

    print("KERNEL_OK")
</pallas_src>

<mosaic_0001>
module attributes {stable_mosaic.version = 11 : i64} {
  func.func @_attention_kernel(%arg0: i32, %arg1: memref<16x32xbf16, #tpu.memory_space<vmem>>, %arg2: memref<32x96xbf16, #tpu.memory_space<vmem>>, %arg3: memref<1x96xf32, #tpu.memory_space<vmem>>, %arg4: memref<32x32xbf16, #tpu.memory_space<vmem>>, %arg5: memref<1x32xf32, #tpu.memory_space<vmem>>, %arg6: memref<16x32xf32, #tpu.memory_space<vmem>>, %arg7: memref<16x32xf32, #tpu.memory_space<vmem>>) attributes {dimension_semantics = [#tpu.dimension_semantics<arbitrary>], iteration_bounds = array<i64: 1>, scalar_prefetch = 0 : i64, scratch_operands = 1 : i64, tpu.core_type = #tpu.core_type<tc>, window_params = [{pipeline_mode = #tpu.pipeline_mode<synchronous>, transform_indices = @transform_0, window_bounds = array<i64: 16, 32>}, {pipeline_mode = #tpu.pipeline_mode<synchronous>, transform_indices = @transform_1, window_bounds = array<i64: 32, 96>}, {pipeline_mode = #tpu.pipeline_mode<synchronous>, transform_indices = @transform_2, window_bounds = array<i64: 1, 96>}, {pipeline_mode = #tpu.pipeline_mode<synchronous>, transform_indices = @transform_3, window_bounds = array<i64: 32, 32>}, {pipeline_mode = #tpu.pipeline_mode<synchronous>, transform_indices = @transform_4, window_bounds = array<i64: 1, 32>}, {pipeline_mode = #tpu.pipeline_mode<synchronous>, transform_indices = @transform_5, window_bounds = array<i64: 16, 32>}]} {
    %c0 = arith.constant 0 : index
    %c0_0 = arith.constant 0 : index
    %0 = vector.load %arg1[%c0, %c0_0] : memref<16x32xbf16, #tpu.memory_space<vmem>>, vector<16x32xbf16>
    %c0_1 = arith.constant 0 : index
    %c0_2 = arith.constant 0 : index
    %1 = vector.load %arg2[%c0_1, %c0_2] : memref<32x96xbf16, #tpu.memory_space<vmem>>, vector<32x96xbf16>
    %cst = arith.constant dense<0.000000e+00> : vector<16x96xf32>
    %2 = tpu.matmul %0, %1, %cst {dimension_numbers = #tpu.dot_dimension_numbers<[1], [0], [0], [1], [0, 0, 1, 1], [], []>} : vector<16x32xbf16>, vector<32x96xbf16>, vector<16x96xf32> -> vector<16x96xf32>
    %c0_3 = arith.constant 0 : index
    %c0_4 = arith.constant 0 : index
    %3 = vector.load %arg3[%c0_3, %c0_4] : memref<1x96xf32, #tpu.memory_space<vmem>>, vector<1x96xf32>
    %4 = vector.broadcast %3 : vector<1x96xf32> to vector<16x96xf32>
    %5 = arith.addf %2, %4 : vector<16x96xf32>
    %6 = vector.extract_strided_slice %5 {offsets = [0, 0], sizes = [16, 32], strides = [1, 1]} : vector<16x96xf32> to vector<16x32xf32>
    %7 = vector.extract_strided_slice %5 {offsets = [0, 32], sizes = [16, 32], strides = [1, 1]} : vector<16x96xf32> to vector<16x32xf32>
    %8 = vector.extract_strided_slice %5 {offsets = [0, 64], sizes = [16, 32], strides = [1, 1]} : vector<16x96xf32> to vector<16x32xf32>
    %9 = tpu.iota {dimensions = array<i32: 0>} : vector<8x8xi32>
    %10 = tpu.iota {dimensions = array<i32: 1>} : vector<8x8xi32>
    %11 = arith.cmpi sle, %10, %9 : vector<8x8xi32>
    %12 = vector.extract_strided_slice %7 {offsets = [0, 0], sizes = [8, 8], strides = [1, 1]} : vector<16x32xf32> to vector<8x8xf32>
    %13 = arith.truncf %12 : vector<8x8xf32> to vector<8x8xbf16>
    %14 = vector.extract_strided_slice %6 {offsets = [0, 0], sizes = [8, 8], strides = [1, 1]} : vector<16x32xf32> to vector<8x8xf32>
    %15 = arith.truncf %14 : vector<8x8xf32> to vector<8x8xbf16>
    %16 = vector.extract_strided_slice %8 {offsets = [0, 0], sizes = [8, 8], strides = [1, 1]} : vector<16x32xf32> to vector<8x8xf32>
    %17 = arith.truncf %16 : vector<8x8xf32> to vector<8x8xbf16>
    %cst_5 = arith.constant dense<0.000000e+00> : vector<8x8xf32>
    %18 = tpu.matmul %13, %15, %cst_5 {dimension_numbers = #tpu.dot_dimension_numbers<[1], [1], [0], [0], [0, 0, 1, 0], [], []>} : vector<8x8xbf16>, vector<8x8xbf16>, vector<8x8xf32> -> vector<8x8xf32>
    %cst_6 = arith.constant -1.000000e+30 : f32
    %19 = vector.broadcast %cst_6 : f32 to vector<8x8xf32>
    %20 = arith.select %11, %18, %19 : vector<8x8xi1>, vector<8x8xf32>
    %cst_7 = arith.constant dense<0xFF800000> : vector<8xf32>
    %21 = vector.multi_reduction <maximumf>, %20, %cst_7 [1] : vector<8x8xf32> to vector<8xf32>
    %22 = vector.shape_cast %21 : vector<8xf32> to vector<8x1xf32>
    %23 = vector.broadcast %22 : vector<8x1xf32> to vector<8x8xf32>
    %24 = arith.subf %20, %23 : vector<8x8xf32>
    %25 = math.exp %24 : vector<8x8xf32>
    %cst_8 = arith.constant dense<0.000000e+00> : vector<8xf32>
    %26 = vector.multi_reduction <add>, %25, %cst_8 [1] : vector<8x8xf32> to vector<8xf32>
    %27 = vector.shape_cast %26 : vector<8xf32> to vector<8x1xf32>
    %28 = arith.truncf %25 : vector<8x8xf32> to vector<8x8xbf16>
    %cst_9 = arith.constant dense<0.000000e+00> : vector<8x8xf32>
    %29 = tpu.matmul %28, %17, %cst_9 {dimension_numbers = #tpu.dot_dimension_numbers<[1], [0], [0], [1], [0, 0, 1, 1], [], []>} : vector<8x8xbf16>, vector<8x8xbf16>, vector<8x8xf32> -> vector<8x8xf32>
    %30 = tpu.reciprocal %27 {approx = true} : vector<8x1xf32> -> vector<8x1xf32>
    %31 = vector.broadcast %30 : vector<8x1xf32> to vector<8x8xf32>
    %32 = arith.mulf %29, %31 : vector<8x8xf32>
    %c0_10 = arith.constant 0 : index
    %c0_11 = arith.constant 0 : index
    %33 = vector.load %arg7[%c0_10, %c0_11] : memref<16x32xf32, #tpu.memory_space<vmem>>, vector<8x8xf32>
    tpu.vector_store %arg7[%c0_10, %c0_11], %32 {strides = array<i32>} : memref<16x32xf32, #tpu.memory_space<vmem>>, vector<8x8xf32>,
    %34 = vector.extract_strided_slice %7 {offsets = [0, 8], sizes = [8, 8], strides = [1, 1]} : vector<16x32xf32> to vector<8x8xf32>
    %35 = arith.truncf %34 : vector<8x8xf32> to vector<8x8xbf16>
    %36 = vector.extract_strided_slice %6 {offsets = [0, 8], sizes = [8, 8], strides = [1, 1]} : vector<16x32xf32> to vector<8x8xf32>
    %37 = arith.truncf %36 : vector<8x8xf32> to vector<8x8xbf16>
    %38 = vector.extract_strided_slice %8 {offsets = [0, 8], sizes = [8, 8], strides = [1, 1]} : vector<16x32xf32> to vector<8x8xf32>
    %39 = arith.truncf %38 : vector<8x8xf32> to vector<8x8xbf16>
    %cst_12 = arith.constant dense<0.000000e+00> : vector<8x8xf32>
    %40 = tpu.matmul %35, %37, %cst_12 {dimension_numbers = #tpu.dot_dimension_numbers<[1], [1], [0], [0], [0, 0, 1, 0], [], []>} : vector<8x8xbf16>, vector<8x8xbf16>, vector<8x8xf32> -> vector<8x8xf32>
    %cst_13 = arith.constant -1.000000e+30 : f32
    %41 = vector.broadcast %cst_13 : f32 to vector<8x8xf32>
    %42 = arith.select %11, %40, %41 : vector<8x8xi1>, vector<8x8xf32>
    %cst_14 = arith.constant dense<0xFF800000> : vector<8xf32>
    %43 = vector.multi_reduction <maximumf>, %42, %cst_14 [1] : vector<8x8xf32> to vector<8xf32>
    %44 = vector.shape_cast %43 : vector<8xf32> to vector<8x1xf32>
    %45 = vector.broadcast %44 : vector<8x1xf32> to vector<8x8xf32>
    %46 = arith.subf %42, %45 : vector<8x8xf32>
    %47 = math.exp %46 : vector<8x8xf32>
    %cst_15 = arith.constant dense<0.000000e+00> : vector<8xf32>
    %48 = vector.multi_reduction <add>, %47, %cst_15 [1] : vector<8x8xf32> to vector<8xf32>
    %49 = vector.shape_cast %48 : vector<8xf32> to vector<8x1xf32>
    %50 = arith.truncf %47 : vector<8x8xf32> to vector<8x8xbf16>
    %cst_16 = arith.constant dense<0.000000e+00> : vector<8x8xf32>
    %51 = tpu.matmul %50, %39, %cst_16 {dimension_numbers = #tpu.dot_dimension_numbers<[1], [0], [0], [1], [0, 0, 1, 1], [], []>} : vector<8x8xbf16>, vector<8x8xbf16>, vector<8x8xf32> -> vector<8x8xf32>
    %52 = tpu.reciprocal %49 {approx = true} : vector<8x1xf32> -> vector<8x1xf32>
    %53 = vector.broadcast %52 : vector<8x1xf32> to vector<8x8xf32>
    %54 = arith.mulf %51, %53 : vector<8x8xf32>
    %c0_17 = arith.constant 0 : index
    %c8 = arith.constant 8 : index
    %55 = vector.load %arg7[%c0_17, %c8] : memref<16x32xf32, #tpu.memory_space<vmem>>, vector<8x8xf32>
    tpu.vector_store %arg7[%c0_17, %c8], %54 {strides = array<i32>} : memref<16x32xf32, #tpu.memory_space<vmem>>, vector<8x8xf32>,
    %56 = vector.extract_strided_slice %7 {offsets = [0, 16], sizes = [8, 8], strides = [1, 1]} : vector<16x32xf32> to vector<8x8xf32>
    %57 = arith.truncf %56 : vector<8x8xf32> to vector<8x8xbf16>
    %58 = vector.extract_strided_slice %6 {offsets = [0, 16], sizes = [8, 8], strides = [1, 1]} : vector<16x32xf32> to vector<8x8xf32>
    %59 = arith.truncf %58 : vector<8x8xf32> to vector<8x8xbf16>
    %60 = vector.extract_strided_slice %8 {offsets = [0, 16], sizes = [8, 8], strides = [1, 1]} : vector<16x32xf32> to vector<8x8xf32>
    %61 = arith.truncf %60 : vector<8x8xf32> to vector<8x8xbf16>
    %cst_18 = arith.constant dense<0.000000e+00> : vector<8x8xf32>
    %62 = tpu.matmul %57, %59, %cst_18 {dimension_numbers = #tpu.dot_dimension_numbers<[1], [1], [0], [0], [0, 0, 1, 0], [], []>} : vector<8x8xbf16>, vector<8x8xbf16>, vector<8x8xf32> -> vector<8x8xf32>
    %cst_19 = arith.constant -1.000000e+30 : f32
    %63 = vector.broadcast %cst_19 : f32 to vector<8x8xf32>
    %64 = arith.select %11, %62, %63 : vector<8x8xi1>, vector<8x8xf32>
    %cst_20 = arith.constant dense<0xFF800000> : vector<8xf32>
    %65 = vector.multi_reduction <maximumf>, %64, %cst_20 [1] : vector<8x8xf32> to vector<8xf32>
    %66 = vector.shape_cast %65 : vector<8xf32> to vector<8x1xf32>
    %67 = vector.broadcast %66 : vector<8x1xf32> to vector<8x8xf32>
    %68 = arith.subf %64, %67 : vector<8x8xf32>
    %69 = math.exp %68 : vector<8x8xf32>
    %cst_21 = arith.constant dense<0.000000e+00> : vector<8xf32>
    %70 = vector.multi_reduction <add>, %69, %cst_21 [1] : vector<8x8xf32> to vector<8xf32>
    %71 = vector.shape_cast %70 : vector<8xf32> to vector<8x1xf32>
    %72 = arith.truncf %69 : vector<8x8xf32> to vector<8x8xbf16>
    %cst_22 = arith.constant dense<0.000000e+00> : vector<8x8xf32>
    %73 = tpu.matmul %72, %61, %cst_22 {dimension_numbers = #tpu.dot_dimension_numbers<[1], [0], [0], [1], [0, 0, 1, 1], [], []>} : vector<8x8xbf16>, vector<8x8xbf16>, vector<8x8xf32> -> vector<8x8xf32>
    %74 = tpu.reciprocal %71 {approx = true} : vector<8x1xf32> -> vector<8x1xf32>
    %75 = vector.broadcast %74 : vector<8x1xf32> to vector<8x8xf32>
    %76 = arith.mulf %73, %75 : vector<8x8xf32>
    %c0_23 = arith.constant 0 : index
    %c16 = arith.constant 16 : index
    %77 = vector.load %arg7[%c0_23, %c16] : memref<16x32xf32, #tpu.memory_space<vmem>>, vector<8x8xf32>
    tpu.vector_store %arg7[%c0_23, %c16], %76 {strides = array<i32>} : memref<16x32xf32, #tpu.memory_space<vmem>>, vector<8x8xf32>,
    %78 = vector.extract_strided_slice %7 {offsets = [0, 24], sizes = [8, 8], strides = [1, 1]} : vector<16x32xf32> to vector<8x8xf32>
    %79 = arith.truncf %78 : vector<8x8xf32> to vector<8x8xbf16>
    %80 = vector.extract_strided_slice %6 {offsets = [0, 24], sizes = [8, 8], strides = [1, 1]} : vector<16x32xf32> to vector<8x8xf32>
    %81 = arith.truncf %80 : vector<8x8xf32> to vector<8x8xbf16>
    %82 = vector.extract_strided_slice %8 {offsets = [0, 24], sizes = [8, 8], strides = [1, 1]} : vector<16x32xf32> to vector<8x8xf32>
    %83 = arith.truncf %82 : vector<8x8xf32> to vector<8x8xbf16>
    %cst_24 = arith.constant dense<0.000000e+00> : vector<8x8xf32>
    %84 = tpu.matmul %79, %81, %cst_24 {dimension_numbers = #tpu.dot_dimension_numbers<[1], [1], [0], [0], [0, 0, 1, 0], [], []>} : vector<8x8xbf16>, vector<8x8xbf16>, vector<8x8xf32> -> vector<8x8xf32>
    %cst_25 = arith.constant -1.000000e+30 : f32
    %85 = vector.broadcast %cst_25 : f32 to vector<8x8xf32>
    %86 = arith.select %11, %84, %85 : vector<8x8xi1>, vector<8x8xf32>
    %cst_26 = arith.constant dense<0xFF800000> : vector<8xf32>
    %87 = vector.multi_reduction <maximumf>, %86, %cst_26 [1] : vector<8x8xf32> to vector<8xf32>
    %88 = vector.shape_cast %87 : vector<8xf32> to vector<8x1xf32>
    %89 = vector.broadcast %88 : vector<8x1xf32> to vector<8x8xf32>
    %90 = arith.subf %86, %89 : vector<8x8xf32>
    %91 = math.exp %90 : vector<8x8xf32>
    %cst_27 = arith.constant dense<0.000000e+00> : vector<8xf32>
    %92 = vector.multi_reduction <add>, %91, %cst_27 [1] : vector<8x8xf32> to vector<8xf32>
    %93 = vector.shape_cast %92 : vector<8xf32> to vector<8x1xf32>
    %94 = arith.truncf %91 : vector<8x8xf32> to vector<8x8xbf16>
    %cst_28 = arith.constant dense<0.000000e+00> : vector<8x8xf32>
    %95 = tpu.matmul %94, %83, %cst_28 {dimension_numbers = #tpu.dot_dimension_numbers<[1], [0], [0], [1], [0, 0, 1, 1], [], []>} : vector<8x8xbf16>, vector<8x8xbf16>, vector<8x8xf32> -> vector<8x8xf32>
    %96 = tpu.reciprocal %93 {approx = true} : vector<8x1xf32> -> vector<8x1xf32>
    %97 = vector.broadcast %96 : vector<8x1xf32> to vector<8x8xf32>
    %98 = arith.mulf %95, %97 : vector<8x8xf32>
    %c0_29 = arith.constant 0 : index
    %c24 = arith.constant 24 : index
    %99 = vector.load %arg7[%c0_29, %c24] : memref<16x32xf32, #tpu.memory_space<vmem>>, vector<8x8xf32>
    tpu.vector_store %arg7[%c0_29, %c24], %98 {strides = array<i32>} : memref<16x32xf32, #tpu.memory_space<vmem>>, vector<8x8xf32>,
    %100 = vector.extract_strided_slice %7 {offsets = [8, 0], sizes = [8, 8], strides = [1, 1]} : vector<16x32xf32> to vector<8x8xf32>
    %101 = arith.truncf %100 : vector<8x8xf32> to vector<8x8xbf16>
    %102 = vector.extract_strided_slice %6 {offsets = [8, 0], sizes = [8, 8], strides = [1, 1]} : vector<16x32xf32> to vector<8x8xf32>
    %103 = arith.truncf %102 : vector<8x8xf32> to vector<8x8xbf16>
    %104 = vector.extract_strided_slice %8 {offsets = [8, 0], sizes = [8, 8], strides = [1, 1]} : vector<16x32xf32> to vector<8x8xf32>
    %105 = arith.truncf %104 : vector<8x8xf32> to vector<8x8xbf16>
    %cst_30 = arith.constant dense<0.000000e+00> : vector<8x8xf32>
    %106 = tpu.matmul %101, %103, %cst_30 {dimension_numbers = #tpu.dot_dimension_numbers<[1], [1], [0], [0], [0, 0, 1, 0], [], []>} : vector<8x8xbf16>, vector<8x8xbf16>, vector<8x8xf32> -> vector<8x8xf32>
    %cst_31 = arith.constant -1.000000e+30 : f32
    %107 = vector.broadcast %cst_31 : f32 to vector<8x8xf32>
    %108 = arith.select %11, %106, %107 : vector<8x8xi1>, vector<8x8xf32>
    %cst_32 = arith.constant dense<0xFF800000> : vector<8xf32>
    %109 = vector.multi_reduction <maximumf>, %108, %cst_32 [1] : vector<8x8xf32> to vector<8xf32>
    %110 = vector.shape_cast %109 : vector<8xf32> to vector<8x1xf32>
    %111 = vector.broadcast %110 : vector<8x1xf32> to vector<8x8xf32>
    %112 = arith.subf %108, %111 : vector<8x8xf32>
    %113 = math.exp %112 : vector<8x8xf32>
    %cst_33 = arith.constant dense<0.000000e+00> : vector<8xf32>
    %114 = vector.multi_reduction <add>, %113, %cst_33 [1] : vector<8x8xf32> to vector<8xf32>
    %115 = vector.shape_cast %114 : vector<8xf32> to vector<8x1xf32>
    %116 = arith.truncf %113 : vector<8x8xf32> to vector<8x8xbf16>
    %cst_34 = arith.constant dense<0.000000e+00> : vector<8x8xf32>
    %117 = tpu.matmul %116, %105, %cst_34 {dimension_numbers = #tpu.dot_dimension_numbers<[1], [0], [0], [1], [0, 0, 1, 1], [], []>} : vector<8x8xbf16>, vector<8x8xbf16>, vector<8x8xf32> -> vector<8x8xf32>
    %118 = tpu.reciprocal %115 {approx = true} : vector<8x1xf32> -> vector<8x1xf32>
    %119 = vector.broadcast %118 : vector<8x1xf32> to vector<8x8xf32>
    %120 = arith.mulf %117, %119 : vector<8x8xf32>
    %c8_35 = arith.constant 8 : index
    %c0_36 = arith.constant 0 : index
    %121 = vector.load %arg7[%c8_35, %c0_36] : memref<16x32xf32, #tpu.memory_space<vmem>>, vector<8x8xf32>
    tpu.vector_store %arg7[%c8_35, %c0_36], %120 {strides = array<i32>} : memref<16x32xf32, #tpu.memory_space<vmem>>, vector<8x8xf32>,
    %122 = vector.extract_strided_slice %7 {offsets = [8, 8], sizes = [8, 8], strides = [1, 1]} : vector<16x32xf32> to vector<8x8xf32>
    %123 = arith.truncf %122 : vector<8x8xf32> to vector<8x8xbf16>
    %124 = vector.extract_strided_slice %6 {offsets = [8, 8], sizes = [8, 8], strides = [1, 1]} : vector<16x32xf32> to vector<8x8xf32>
    %125 = arith.truncf %124 : vector<8x8xf32> to vector<8x8xbf16>
    %126 = vector.extract_strided_slice %8 {offsets = [8, 8], sizes = [8, 8], strides = [1, 1]} : vector<16x32xf32> to vector<8x8xf32>
    %127 = arith.truncf %126 : vector<8x8xf32> to vector<8x8xbf16>
    %cst_37 = arith.constant dense<0.000000e+00> : vector<8x8xf32>
    %128 = tpu.matmul %123, %125, %cst_37 {dimension_numbers = #tpu.dot_dimension_numbers<[1], [1], [0], [0], [0, 0, 1, 0], [], []>} : vector<8x8xbf16>, vector<8x8xbf16>, vector<8x8xf32> -> vector<8x8xf32>
    %cst_38 = arith.constant -1.000000e+30 : f32
    %129 = vector.broadcast %cst_38 : f32 to vector<8x8xf32>
    %130 = arith.select %11, %128, %129 : vector<8x8xi1>, vector<8x8xf32>
    %cst_39 = arith.constant dense<0xFF800000> : vector<8xf32>
    %131 = vector.multi_reduction <maximumf>, %130, %cst_39 [1] : vector<8x8xf32> to vector<8xf32>
    %132 = vector.shape_cast %131 : vector<8xf32> to vector<8x1xf32>
    %133 = vector.broadcast %132 : vector<8x1xf32> to vector<8x8xf32>
    %134 = arith.subf %130, %133 : vector<8x8xf32>
    %135 = math.exp %134 : vector<8x8xf32>
    %cst_40 = arith.constant dense<0.000000e+00> : vector<8xf32>
    %136 = vector.multi_reduction <add>, %135, %cst_40 [1] : vector<8x8xf32> to vector<8xf32>
    %137 = vector.shape_cast %136 : vector<8xf32> to vector<8x1xf32>
    %138 = arith.truncf %135 : vector<8x8xf32> to vector<8x8xbf16>
    %cst_41 = arith.constant dense<0.000000e+00> : vector<8x8xf32>
    %139 = tpu.matmul %138, %127, %cst_41 {dimension_numbers = #tpu.dot_dimension_numbers<[1], [0], [0], [1], [0, 0, 1, 1], [], []>} : vector<8x8xbf16>, vector<8x8xbf16>, vector<8x8xf32> -> vector<8x8xf32>
    %140 = tpu.reciprocal %137 {approx = true} : vector<8x1xf32> -> vector<8x1xf32>
    %141 = vector.broadcast %140 : vector<8x1xf32> to vector<8x8xf32>
    %142 = arith.mulf %139, %141 : vector<8x8xf32>
    %c8_42 = arith.constant 8 : index
    %c8_43 = arith.constant 8 : index
    %143 = vector.load %arg7[%c8_42, %c8_43] : memref<16x32xf32, #tpu.memory_space<vmem>>, vector<8x8xf32>
    tpu.vector_store %arg7[%c8_42, %c8_43], %142 {strides = array<i32>} : memref<16x32xf32, #tpu.memory_space<vmem>>, vector<8x8xf32>,
    %144 = vector.extract_strided_slice %7 {offsets = [8, 16], sizes = [8, 8], strides = [1, 1]} : vector<16x32xf32> to vector<8x8xf32>
    %145 = arith.truncf %144 : vector<8x8xf32> to vector<8x8xbf16>
    %146 = vector.extract_strided_slice %6 {offsets = [8, 16], sizes = [8, 8], strides = [1, 1]} : vector<16x32xf32> to vector<8x8xf32>
    %147 = arith.truncf %146 : vector<8x8xf32> to vector<8x8xbf16>
    %148 = vector.extract_strided_slice %8 {offsets = [8, 16], sizes = [8, 8], strides = [1, 1]} : vector<16x32xf32> to vector<8x8xf32>
    %149 = arith.truncf %148 : vector<8x8xf32> to vector<8x8xbf16>
    %cst_44 = arith.constant dense<0.000000e+00> : vector<8x8xf32>
    %150 = tpu.matmul %145, %147, %cst_44 {dimension_numbers = #tpu.dot_dimension_numbers<[1], [1], [0], [0], [0, 0, 1, 0], [], []>} : vector<8x8xbf16>, vector<8x8xbf16>, vector<8x8xf32> -> vector<8x8xf32>
    %cst_45 = arith.constant -1.000000e+30 : f32
    %151 = vector.broadcast %cst_45 : f32 to vector<8x8xf32>
    %152 = arith.select %11, %150, %151 : vector<8x8xi1>, vector<8x8xf32>
    %cst_46 = arith.constant dense<0xFF800000> : vector<8xf32>
    %153 = vector.multi_reduction <maximumf>, %152, %cst_46 [1] : vector<8x8xf32> to vector<8xf32>
    %154 = vector.shape_cast %153 : vector<8xf32> to vector<8x1xf32>
    %155 = vector.broadcast %154 : vector<8x1xf32> to vector<8x8xf32>
    %156 = arith.subf %152, %155 : vector<8x8xf32>
    %157 = math.exp %156 : vector<8x8xf32>
    %cst_47 = arith.constant dense<0.000000e+00> : vector<8xf32>
    %158 = vector.multi_reduction <add>, %157, %cst_47 [1] : vector<8x8xf32> to vector<8xf32>
    %159 = vector.shape_cast %158 : vector<8xf32> to vector<8x1xf32>
    %160 = arith.truncf %157 : vector<8x8xf32> to vector<8x8xbf16>
    %cst_48 = arith.constant dense<0.000000e+00> : vector<8x8xf32>
    %161 = tpu.matmul %160, %149, %cst_48 {dimension_numbers = #tpu.dot_dimension_numbers<[1], [0], [0], [1], [0, 0, 1, 1], [], []>} : vector<8x8xbf16>, vector<8x8xbf16>, vector<8x8xf32> -> vector<8x8xf32>
    %162 = tpu.reciprocal %159 {approx = true} : vector<8x1xf32> -> vector<8x1xf32>
    %163 = vector.broadcast %162 : vector<8x1xf32> to vector<8x8xf32>
    %164 = arith.mulf %161, %163 : vector<8x8xf32>
    %c8_49 = arith.constant 8 : index
    %c16_50 = arith.constant 16 : index
    %165 = vector.load %arg7[%c8_49, %c16_50] : memref<16x32xf32, #tpu.memory_space<vmem>>, vector<8x8xf32>
    tpu.vector_store %arg7[%c8_49, %c16_50], %164 {strides = array<i32>} : memref<16x32xf32, #tpu.memory_space<vmem>>, vector<8x8xf32>,
    %166 = vector.extract_strided_slice %7 {offsets = [8, 24], sizes = [8, 8], strides = [1, 1]} : vector<16x32xf32> to vector<8x8xf32>
    %167 = arith.truncf %166 : vector<8x8xf32> to vector<8x8xbf16>
    %168 = vector.extract_strided_slice %6 {offsets = [8, 24], sizes = [8, 8], strides = [1, 1]} : vector<16x32xf32> to vector<8x8xf32>
    %169 = arith.truncf %168 : vector<8x8xf32> to vector<8x8xbf16>
    %170 = vector.extract_strided_slice %8 {offsets = [8, 24], sizes = [8, 8], strides = [1, 1]} : vector<16x32xf32> to vector<8x8xf32>
    %171 = arith.truncf %170 : vector<8x8xf32> to vector<8x8xbf16>
    %cst_51 = arith.constant dense<0.000000e+00> : vector<8x8xf32>
    %172 = tpu.matmul %167, %169, %cst_51 {dimension_numbers = #tpu.dot_dimension_numbers<[1], [1], [0], [0], [0, 0, 1, 0], [], []>} : vector<8x8xbf16>, vector<8x8xbf16>, vector<8x8xf32> -> vector<8x8xf32>
    %cst_52 = arith.constant -1.000000e+30 : f32
    %173 = vector.broadcast %cst_52 : f32 to vector<8x8xf32>
    %174 = arith.select %11, %172, %173 : vector<8x8xi1>, vector<8x8xf32>
    %cst_53 = arith.constant dense<0xFF800000> : vector<8xf32>
    %175 = vector.multi_reduction <maximumf>, %174, %cst_53 [1] : vector<8x8xf32> to vector<8xf32>
    %176 = vector.shape_cast %175 : vector<8xf32> to vector<8x1xf32>
    %177 = vector.broadcast %176 : vector<8x1xf32> to vector<8x8xf32>
    %178 = arith.subf %174, %177 : vector<8x8xf32>
    %179 = math.exp %178 : vector<8x8xf32>
    %cst_54 = arith.constant dense<0.000000e+00> : vector<8xf32>
    %180 = vector.multi_reduction <add>, %179, %cst_54 [1] : vector<8x8xf32> to vector<8xf32>
    %181 = vector.shape_cast %180 : vector<8xf32> to vector<8x1xf32>
    %182 = arith.truncf %179 : vector<8x8xf32> to vector<8x8xbf16>
    %cst_55 = arith.constant dense<0.000000e+00> : vector<8x8xf32>
    %183 = tpu.matmul %182, %171, %cst_55 {dimension_numbers = #tpu.dot_dimension_numbers<[1], [0], [0], [1], [0, 0, 1, 1], [], []>} : vector<8x8xbf16>, vector<8x8xbf16>, vector<8x8xf32> -> vector<8x8xf32>
    %184 = tpu.reciprocal %181 {approx = true} : vector<8x1xf32> -> vector<8x1xf32>
    %185 = vector.broadcast %184 : vector<8x1xf32> to vector<8x8xf32>
    %186 = arith.mulf %183, %185 : vector<8x8xf32>
    %c8_56 = arith.constant 8 : index
    %c24_57 = arith.constant 24 : index
    %187 = vector.load %arg7[%c8_56, %c24_57] : memref<16x32xf32, #tpu.memory_space<vmem>>, vector<8x8xf32>
    tpu.vector_store %arg7[%c8_56, %c24_57], %186 {strides = array<i32>} : memref<16x32xf32, #tpu.memory_space<vmem>>, vector<8x8xf32>,
    %c0_58 = arith.constant 0 : index
    %c0_59 = arith.constant 0 : index
    %188 = vector.load %arg7[%c0_58, %c0_59] : memref<16x32xf32, #tpu.memory_space<vmem>>, vector<16x32xf32>
    %189 = arith.truncf %188 : vector<16x32xf32> to vector<16x32xbf16>
    %c0_60 = arith.constant 0 : index
    %c0_61 = arith.constant 0 : index
    %190 = vector.load %arg4[%c0_60, %c0_61] : memref<32x32xbf16, #tpu.memory_space<vmem>>, vector<32x32xbf16>
    %cst_62 = arith.constant dense<0.000000e+00> : vector<16x32xf32>
    %191 = tpu.matmul %189, %190, %cst_62 {dimension_numbers = #tpu.dot_dimension_numbers<[1], [0], [0], [1], [0, 0, 1, 1], [], []>} : vector<16x32xbf16>, vector<32x32xbf16>, vector<16x32xf32> -> vector<16x32xf32>
    %c0_63 = arith.constant 0 : index
    %c0_64 = arith.constant 0 : index
    %192 = vector.load %arg5[%c0_63, %c0_64] : memref<1x32xf32, #tpu.memory_space<vmem>>, vector<1x32xf32>
    %193 = vector.broadcast %192 : vector<1x32xf32> to vector<16x32xf32>
    %194 = arith.addf %191, %193 : vector<16x32xf32>
    %c0_65 = arith.constant 0 : index
    %c0_66 = arith.constant 0 : index
    %195 = vector.load %arg6[%c0_65, %c0_66] : memref<16x32xf32, #tpu.memory_space<vmem>>, vector<16x32xf32>
    tpu.vector_store %arg6[%c0_65, %c0_66], %194 {strides = array<i32>} : memref<16x32xf32, #tpu.memory_space<vmem>>, vector<16x32xf32>,
    return
  }
  func.func @transform_0(%arg0: i32) -> (i32, i32) {
    %c0_i32 = arith.constant 0 : i32
    %c0_i32_0 = arith.constant 0 : i32
    %c0_i32_1 = arith.constant 0 : i32
    return %c0_i32, %c0_i32_0 : i32, i32
  }
  func.func @transform_1(%arg0: i32) -> (i32, i32) {
    %c0_i32 = arith.constant 0 : i32
    %c0_i32_0 = arith.constant 0 : i32
    %c0_i32_1 = arith.constant 0 : i32
    return %c0_i32, %c0_i32_0 : i32, i32
  }
  func.func @transform_2(%arg0: i32) -> (i32, i32) {
    %c0_i32 = arith.constant 0 : i32
    %c0_i32_0 = arith.constant 0 : i32
    %c0_i32_1 = arith.constant 0 : i32
    return %c0_i32, %c0_i32_0 : i32, i32
  }
  func.func @transform_3(%arg0: i32) -> (i32, i32) {
    %c0_i32 = arith.constant 0 : i32
    %c0_i32_0 = arith.constant 0 : i32
    %c0_i32_1 = arith.constant 0 : i32
    return %c0_i32, %c0_i32_0 : i32, i32
  }
  func.func @transform_4(%arg0: i32) -> (i32, i32) {
    %c0_i32 = arith.constant 0 : i32
    %c0_i32_0 = arith.constant 0 : i32
    %c0_i32_1 = arith.constant 0 : i32
    return %c0_i32, %c0_i32_0 : i32, i32
  }
  func.func @transform_5(%arg0: i32) -> (i32, i32) {
    %c0_i32 = arith.constant 0 : i32
    %c0_i32_0 = arith.constant 0 : i32
    %c0_i32_1 = arith.constant 0 : i32
    return %c0_i32, %c0_i32_0 : i32, i32
  }
}

</mosaic_0001>

<llo_original>
// kernel: tpu_custom_call.1
$region0: #{tpu_custom_call.1}
  #allocation0 [shape = 'u32[]', space=smem, size = 0x4, offset = 0x4, fixed_abs, tag = 'smem constant byte address 0x4 - core index']
  #allocation1 [shape = 'u32[72,128]{1,0:T(1,128)}', space=vmem, size = 0x9000, scoped, tag = 'internal scratch']
  #allocation2 [shape = 'f32[16,32]{1,0:T(8,128)}', space=vmem, size = 0x2000, scoped, tag = 'scratch operand']
  %s0 = inlined_call_operand.hbm [shape: bf16[16,32], index: 0, kind: input, shape index: {}]
  %s1 = inlined_call_operand.hbm [shape: bf16[32,96], index: 1, kind: input, shape index: {}]
  %s2 = inlined_call_operand.vmem [shape: f32[1,96], index: 2, kind: input, shape index: {}]
  %s3 = inlined_call_operand.hbm [shape: bf16[32,32], index: 3, kind: input, shape index: {}]
  %s4 = inlined_call_operand.vmem [shape: f32[1,32], index: 4, kind: input, shape index: {}]
  %s5 = inlined_call_operand.hbm [shape: f32[16,32], index: 5, kind: output, shape index: {}]
  %s6 = sld [smem:[#allocation0]]
  $region42: #{tpu_custom_call.1} parent=0
    _
  %s8 = ssub.s32 1, %s6
  %s9 = scalar_select 0, %s8, %s6
  $region1: #{tpu_custom_call.1} parent=0
    #allocation3 [shape = 'u8[4096]{0}', space=vmem, size = 0x1000, scoped, tag = 'input window, operand 0, single buffered']
    #allocation4 [shape = 's32[1]{0}', space=sflag, size = 0x4, scoped, tag = 'scoped memory for tpu_custom_call.1']
    #allocation5 [shape = 's32[1]{0}', space=sflag, size = 0x4, scoped, tag = 'scoped memory for tpu_custom_call.1']
    #allocation6 [shape = 'u8[8192]{0}', space=vmem, size = 0x2000, scoped, tag = 'input window, operand 1, single buffered']
    #allocation7 [shape = 's32[1]{0}', space=sflag, size = 0x4, scoped, tag = 'scoped memory for tpu_custom_call.1']
    #allocation8 [shape = 'u8[8192]{0}', space=vmem, size = 0x2000, scoped, tag = 'input window, operand 3, single buffered']
    #allocation9 [shape = 'u8[8192]{0}', space=vmem, size = 0x2000, scoped, tag = 'output window, operand 0, single buffered']
    %10 = vsyncpa [#allocation4], 0
    %11 = vsyncpa [#allocation7], 0
    %12 = vsyncpa [#allocation5], 0
    // Predicated region
    $region2: #{tpu_custom_call.1} parent=1 // pred_check
      _
    $region3: #{tpu_custom_call.1} parent=1 // pred_check_branch
      %14 = sbr.rel (0) target = $region5
    $region4: #{tpu_custom_call.1} parent=1 // pred_region
      %16 = vsyncadd [#allocation4], 0
      %s17 = sshll.u32 %s0, 4
      %s18 = int_to_ptr.hbm [resolvable:$true] %s17
      %s19 = sshll.u32 [#allocation3], 4
      %s20 = int_to_ptr.vmem [resolvable:$true] %s19
      %25 = dma.hbm_to_vmem [thread:$0]  %s18, 128, %s20, [#allocation4], 64, 64, 4
    $region5: #{tpu_custom_call.1} parent=1 // pred_fallthru
      _
    // Predicated region
    $region6: #{tpu_custom_call.1} parent=1 // pred_check
      _
    $region7: #{tpu_custom_call.1} parent=1 // pred_check_branch
      %27 = sbr.rel (0) target = $region9
    $region8: #{tpu_custom_call.1} parent=1 // pred_region
      %29 = vsyncadd [#allocation7], 0
      %s30 = sshll.u32 %s1, 4
      %s31 = int_to_ptr.hbm [resolvable:$true] %s30
      %s32 = sshll.u32 [#allocation6], 4
      %s33 = int_to_ptr.vmem [resolvable:$true] %s32
      %38 = dma.hbm_to_vmem [thread:$0]  %s31, 256, %s33, [#allocation7], 64, 64, 4
    $region9: #{tpu_custom_call.1} parent=1 // pred_fallthru
      _
    // Predicated region
    $region10: #{tpu_custom_call.1} parent=1 // pred_check
      _
    $region11: #{tpu_custom_call.1} parent=1 // pred_check_branch
      %40 = sbr.rel (0) target = $region13
    $region12: #{tpu_custom_call.1} parent=1 // pred_region
      _
    $region13: #{tpu_custom_call.1} parent=1 // pred_fallthru
      _
    // Predicated region
    $region14: #{tpu_custom_call.1} parent=1 // pred_check
      _
    $region15: #{tpu_custom_call.1} parent=1 // pred_check_branch
      %42 = sbr.rel (0) target = $region17
    $region16: #{tpu_custom_call.1} parent=1 // pred_region
      %44 = vsyncadd [#allocation7], 0
      %s45 = sshll.u32 %s3, 4
      %s46 = int_to_ptr.hbm [resolvable:$true] %s45
      %s47 = sshll.u32 [#allocation8], 4
      %s48 = int_to_ptr.vmem [resolvable:$true] %s47
      %53 = dma.hbm_to_vmem [thread:$0]  %s46, 256, %s48, [#allocation7], 64, 64, 4
    $region17: #{tpu_custom_call.1} parent=1 // pred_fallthru
      _
    // Predicated region
    $region18: #{tpu_custom_call.1} parent=1 // pred_check
      _
    $region19: #{tpu_custom_call.1} parent=1 // pred_check_branch
      %55 = sbr.rel (0) target = $region21
    $region20: #{tpu_custom_call.1} parent=1 // pred_region
      _
    $region21: #{tpu_custom_call.1} parent=1 // pred_fallthru
      _
    // Predicated region
    $region22: #{tpu_custom_call.1} parent=1 // pred_check
      _
    $region23: #{tpu_custom_call.1} parent=1 // pred_check_branch
      %57 = sbr.rel (0) target = $region25
    $region24: #{tpu_custom_call.1} parent=1 // pred_region
      %59 = dma.done [#allocation4], 128
    $region25: #{tpu_custom_call.1} parent=1 // pred_fallthru
      _
    // Predicated region
    $region26: #{tpu_custom_call.1} parent=1 // pred_check
      _
    $region27: #{tpu_custom_call.1} parent=1 // pred_check_branch
      %61 = sbr.rel (0) target = $region29
    $region28: #{tpu_custom_call.1} parent=1 // pred_region
      %63 = dma.done [#allocation7], 256
    $region29: #{tpu_custom_call.1} parent=1 // pred_fallthru
      _
    // Predicated region
    $region30: #{tpu_custom_call.1} parent=1 // pred_check
      _
    $region31: #{tpu_custom_call.1} parent=1 // pred_check_branch
      %65 = sbr.rel (0) target = $region33
    $region32: #{tpu_custom_call.1} parent=1 // pred_region
      %67 = dma.done [#allocation7], 256
    $region33: #{tpu_custom_call.1} parent=1 // pred_fallthru
      _
    %v69 = vld [vmem:[#allocation3] sm:$0xf]
    %v70 = vld [vmem:[#allocation3 + $0x4] sm:$0xf]
    %v71 = vld [vmem:[#allocation6] sm:$0xf]
    %v72 = vld [vmem:[#allocation6 + $0x4] sm:$0xf]
    %v73 = vld [vmem:[#allocation6 + $0x8] sm:$0xf]
    %v74 = vld [vmem:[#allocation6 + $0xc] sm:$0xf]
    %v75 = vld [vmem:[%s2] sm:$0x1]
    %v77 = vperm.slane %v75, 0
    %v81 = vunpack.c.l.b16 %v69
    %v82 = vunpack.c.l.b16 %v70
    %v83 = vpack.c.b16 %v82, %v81
    %v88 = vunpack.c.l.b16 %v71
    %v89 = vunpack.c.l.b16 %v72
    %v90 = vunpack.c.l.b16 %v73
    %v91 = vunpack.c.l.b16 %v74
    %v92 = vpack.c.b16 %v89, %v88
    %v93 = vpack.c.b16 %v91, %v90
    %vm96 = vcmask 261120
    %v98 = vsel %vm96, %v83, 0
    %100 = vmatpush.bf16.msra.mxu0 0
    %101 = vmatpush.bf16.msra.mxu0 0
    %102 = vmatpush.bf16.msra.mxu0 0
    %103 = vmatpush.bf16.msra.mxu0 0
    %104 = vmatpush.bf16.msra.mxu0 0
    %105 = vmatpush.bf16.msra.mxu0 0
    %106 = vmatpush.bf16.msra.mxu0 %v93
    %107 = vmatpush.bf16.msra.mxu0 %v92
    %108 = vmatmul.bf16.gmra.mxu0 %v98
    %v109 = vpop.f32.mrf.mxu0
    %v110 = vadd.f32 %v77, %v109
    %v111 = vpop.f32.mrf.mxu0
    %v112 = vadd.f32 %v77, %v111
    %113 = vdwg.mxu0
    %v114 = vlaneseq
    %v115 = vshrl.u32 %v114, 7
    %v116 = vlaneseq
    %v117 = vand.u32 %v116, 127
    %vm118 = vcmp.le.s32.totalorder %v117, %v115
    %v119 = vpack.c.bf16 %v110, %v110
    %121 = vrot.lane.b32.xlu0 %v119, 96
    %v122 = vpop.permute.xlu0 %121
    %vm123 = vcmask 64512
    %v125 = vsel %vm123, %v122, 0
    %v128 = vsel %vm123, %v119, 0
    %130 = vmatpush.bf16.xpose.msra.mxu0 0
    %131 = vmatpush.bf16.xpose.msra.mxu0 0
    %132 = vmatpush.bf16.xpose.msra.mxu0 0
    %133 = vmatpush.bf16.xpose.msra.mxu0 0
    %134 = vmatpush.bf16.xpose.msra.mxu0 0
    %135 = vmatpush.bf16.xpose.msra.mxu0 0
    %136 = vmatpush.bf16.xpose.msra.mxu0 0
    %137 = vmatpush.bf16.xpose.msra.mxu0 %v128
    %138 = vmatmul.bf16.gmra.mxu0 %v125
    %v139 = vpop.f32.mrf.mxu0
    %v140 = vadd.f32 0.0, %v139
    %v141 = vpop.f32.mrf.mxu0
    %142 = vdwg.mxu0
    %v143 = vsel %vm118, %v140, -1e+30
    %v144 = vsel %vm123, %v143, -inf
    %145 = vmax.xlane.f32.xlu0 %v144
    %v146 = vpop.xlane.xlu0 %145
    %v147 = vsub.f32 %v143, %v146
    %v148 = vmul.f32 %v147, 1.442695
    %v149 = vpow.pop %v148
    %v150 = vsel %vm123, %v149, 0.0
    %151 = vadd.xlane.f32.xlu0 %v150
    %v152 = vpop.xlane.xlu0 %151
    %v153 = vpack.c.bf16 %v149, %v149
    %154 = vrot.lane.b32.xlu0 %v119, 64
    %v155 = vpop.permute.xlu0 %154
    %v157 = vsel %vm123, %v153, 0
    %vm159 = vcmask 1043456
    %v161 = vsel %vm159, %v155, 0
    %163 = vmatpush.bf16.msra.mxu0 0
    %164 = vmatpush.bf16.msra.mxu0 0
    %165 = vmatpush.bf16.msra.mxu0 0
    %166 = vmatpush.bf16.msra.mxu0 0
    %167 = vmatpush.bf16.msra.mxu0 0
    %168 = vmatpush.bf16.msra.mxu0 0
    %169 = vmatpush.bf16.msra.mxu0 0
    %170 = vmatpush.bf16.msra.mxu0 %v161
    %171 = vmatmul.bf16.gmra.mxu0 %v157
    %v172 = vpop.f32.mrf.mxu0
    %v173 = vadd.f32 0.0, %v172
    %v174 = vpop.f32.mrf.mxu0
    %175 = vdwg.mxu0
    %v176 = vrcp.pop %v152
    %v177 = vmul.f32 %v173, %v176
    %178 = vst.msk [vmem:[#allocation2] sm:$0xff] %vm123, %v177
    %179 = vrot.lane.b32.xlu0 %v119, 88
    %v180 = vpop.permute.xlu0 %179
    %181 = vrot.lane.b32.xlu0 %v119, 120
    %v182 = vpop.permute.xlu0 %181
    %v184 = vsel %vm123, %v180, 0
    %v187 = vsel %vm123, %v182, 0
    %189 = vmatpush.bf16.xpose.msra.mxu0 0
    %190 = vmatpush.bf16.xpose.msra.mxu0 0
    %191 = vmatpush.bf16.xpose.msra.mxu0 0
    %192 = vmatpush.bf16.xpose.msra.mxu0 0
    %193 = vmatpush.bf16.xpose.msra.mxu0 0
    %194 = vmatpush.bf16.xpose.msra.mxu0 0
    %195 = vmatpush.bf16.xpose.msra.mxu0 0
    %196 = vmatpush.bf16.xpose.msra.mxu0 %v187
    %197 = vmatmul.bf16.gmra.mxu0 %v184
    %v198 = vpop.f32.mrf.mxu0
    %v199 = vadd.f32 0.0, %v198
    %v200 = vpop.f32.mrf.mxu0
    %201 = vdwg.mxu0
    %v202 = vsel %vm118, %v199, -1e+30
    %v203 = vsel %vm123, %v202, -inf
    %204 = vmax.xlane.f32.xlu0 %v203
    %v205 = vpop.xlane.xlu0 %204
    %v206 = vsub.f32 %v202, %v205
    %v207 = vmul.f32 %v206, 1.442695
    %v208 = vpow.pop %v207
    %v209 = vsel %vm123, %v208, 0.0
    %210 = vadd.xlane.f32.xlu0 %v209
    %v211 = vpop.xlane.xlu0 %210
    %v212 = vpack.c.bf16 %v208, %v208
    %213 = vrot.lane.b32.xlu0 %v119, 56
    %v214 = vpop.permute.xlu0 %213
    %v216 = vsel %vm123, %v212, 0
    %v219 = vsel %vm159, %v214, 0
    %221 = vmatpush.bf16.msra.mxu0 0
    %222 = vmatpush.bf16.msra.mxu0 0
    %223 = vmatpush.bf16.msra.mxu0 0
    %224 = vmatpush.bf16.msra.mxu0 0
    %225 = vmatpush.bf16.msra.mxu0 0
    %226 = vmatpush.bf16.msra.mxu0 0
    %227 = vmatpush.bf16.msra.mxu0 0
    %228 = vmatpush.bf16.msra.mxu0 %v219
    %229 = vmatmul.bf16.gmra.mxu0 %v216
    %v230 = vpop.f32.mrf.mxu0
    %v231 = vadd.f32 0.0, %v230
    %v232 = vpop.f32.mrf.mxu0
    %233 = vdwg.mxu0
    %v234 = vrcp.pop %v211
    %v235 = vmul.f32 %v231, %v234
    %237 = vrot.lane.b32.xlu0 %v235, 8
    %v238 = vpop.permute.xlu0 %237
    %vm240 = vcmask 130112
    %241 = vst.msk [vmem:[#allocation2] sm:$0xff] %vm240, %v238
    %242 = vrot.lane.b32.xlu0 %v119, 80
    %v243 = vpop.permute.xlu0 %242
    %244 = vrot.lane.b32.xlu0 %v119, 112
    %v245 = vpop.permute.xlu0 %244
    %v247 = vsel %vm123, %v243, 0
    %v250 = vsel %vm123, %v245, 0
    %252 = vmatpush.bf16.xpose.msra.mxu0 0
    %253 = vmatpush.bf16.xpose.msra.mxu0 0
    %254 = vmatpush.bf16.xpose.msra.mxu0 0
    %255 = vmatpush.bf16.xpose.msra.mxu0 0
    %256 = vmatpush.bf16.xpose.msra.mxu0 0
    %257 = vmatpush.bf16.xpose.msra.mxu0 0
    %258 = vmatpush.bf16.xpose.msra.mxu0 0
    %259 = vmatpush.bf16.xpose.msra.mxu0 %v250
    %260 = vmatmul.bf16.gmra.mxu0 %v247
    %v261 = vpop.f32.mrf.mxu0
    %v262 = vadd.f32 0.0, %v261
    %v263 = vpop.f32.mrf.mxu0
    %264 = vdwg.mxu0
    %v265 = vsel %vm118, %v262, -1e+30
    %v266 = vsel %vm123, %v265, -inf
    %267 = vmax.xlane.f32.xlu0 %v266
    %v268 = vpop.xlane.xlu0 %267
    %v269 = vsub.f32 %v265, %v268
    %v270 = vmul.f32 %v269, 1.442695
    %v271 = vpow.pop %v270
    %v272 = vsel %vm123, %v271, 0.0
    %273 = vadd.xlane.f32.xlu0 %v272
    %v274 = vpop.xlane.xlu0 %273
    %v275 = vpack.c.bf16 %v271, %v271
    %276 = vrot.lane.b32.xlu0 %v119, 48
    %v277 = vpop.permute.xlu0 %276
    %v279 = vsel %vm123, %v275, 0
    %v282 = vsel %vm159, %v277, 0
    %284 = vmatpush.bf16.msra.mxu0 0
    %285 = vmatpush.bf16.msra.mxu0 0
    %286 = vmatpush.bf16.msra.mxu0 0
    %287 = vmatpush.bf16.msra.mxu0 0
    %288 = vmatpush.bf16.msra.mxu0 0
    %289 = vmatpush.bf16.msra.mxu0 0
    %290 = vmatpush.bf16.msra.mxu0 0
    %291 = vmatpush.bf16.msra.mxu0 %v282
    %292 = vmatmul.bf16.gmra.mxu0 %v279
    %v293 = vpop.f32.mrf.mxu0
    %v294 = vadd.f32 0.0, %v293
    %v295 = vpop.f32.mrf.mxu0
    %296 = vdwg.mxu0
    %v297 = vrcp.pop %v274
    %v298 = vmul.f32 %v294, %v297
    %300 = vrot.lane.b32.xlu0 %v298, 16
    %v301 = vpop.permute.xlu0 %300
    %vm303 = vcmask 195712
    %304 = vst.msk [vmem:[#allocation2] sm:$0xff] %vm303, %v301
    %305 = vrot.lane.b32.xlu0 %v119, 72
    %v306 = vpop.permute.xlu0 %305
    %307 = vrot.lane.b32.xlu0 %v119, 104
    %v308 = vpop.permute.xlu0 %307
    %v310 = vsel %vm123, %v306, 0
    %v313 = vsel %vm123, %v308, 0
    %315 = vmatpush.bf16.xpose.msra.mxu0 0
    %316 = vmatpush.bf16.xpose.msra.mxu0 0
    %317 = vmatpush.bf16.xpose.msra.mxu0 0
    %318 = vmatpush.bf16.xpose.msra.mxu0 0
    %319 = vmatpush.bf16.xpose.msra.mxu0 0
    %320 = vmatpush.bf16.xpose.msra.mxu0 0
    %321 = vmatpush.bf16.xpose.msra.mxu0 0
    %322 = vmatpush.bf16.xpose.msra.mxu0 %v313
    %323 = vmatmul.bf16.gmra.mxu0 %v310
    %v324 = vpop.f32.mrf.mxu0
    %v325 = vadd.f32 0.0, %v324
    %v326 = vpop.f32.mrf.mxu0
    %327 = vdwg.mxu0
    %v328 = vsel %vm118, %v325, -1e+30
    %v329 = vsel %vm123, %v328, -inf
    %330 = vmax.xlane.f32.xlu0 %v329
    %v331 = vpop.xlane.xlu0 %330
    %v332 = vsub.f32 %v328, %v331
    %v333 = vmul.f32 %v332, 1.442695
    %v334 = vpow.pop %v333
    %v335 = vsel %vm123, %v334, 0.0
    %336 = vadd.xlane.f32.xlu0 %v335
    %v337 = vpop.xlane.xlu0 %336
    %v338 = vpack.c.bf16 %v334, %v334
    %339 = vrot.lane.b32.xlu0 %v119, 40
    %v340 = vpop.permute.xlu0 %339
    %v342 = vsel %vm123, %v338, 0
    %v345 = vsel %vm159, %v340, 0
    %347 = vmatpush.bf16.msra.mxu0 0
    %348 = vmatpush.bf16.msra.mxu0 0
    %349 = vmatpush.bf16.msra.mxu0 0
    %350 = vmatpush.bf16.msra.mxu0 0
    %351 = vmatpush.bf16.msra.mxu0 0
    %352 = vmatpush.bf16.msra.mxu0 0
    %353 = vmatpush.bf16.msra.mxu0 0
    %354 = vmatpush.bf16.msra.mxu0 %v345
    %355 = vmatmul.bf16.gmra.mxu0 %v342
    %v356 = vpop.f32.mrf.mxu0
    %v357 = vadd.f32 0.0, %v356
    %v358 = vpop.f32.mrf.mxu0
    %359 = vdwg.mxu0
    %v360 = vrcp.pop %v337
    %v361 = vmul.f32 %v357, %v360
    %363 = vrot.lane.b32.xlu0 %v361, 24
    %v364 = vpop.permute.xlu0 %363
    %vm366 = vcmask 261312
    %367 = vst.msk [vmem:[#allocation2] sm:$0xff] %vm366, %v364
    %v368 = vpack.c.bf16 %v112, %v112
    %370 = vrot.lane.b32.xlu0 %v368, 96
    %v371 = vpop.permute.xlu0 %370
    %v373 = vsel %vm123, %v371, 0
    %v376 = vsel %vm123, %v368, 0
    %378 = vmatpush.bf16.xpose.msra.mxu0 0
    %379 = vmatpush.bf16.xpose.msra.mxu0 0
    %380 = vmatpush.bf16.xpose.msra.mxu0 0
    %381 = vmatpush.bf16.xpose.msra.mxu0 0
    %382 = vmatpush.bf16.xpose.msra.mxu0 0
    %383 = vmatpush.bf16.xpose.msra.mxu0 0
    %384 = vmatpush.bf16.xpose.msra.mxu0 0
    %385 = vmatpush.bf16.xpose.msra.mxu0 %v376
    %386 = vmatmul.bf16.gmra.mxu0 %v373
    %v387 = vpop.f32.mrf.mxu0
    %v388 = vadd.f32 0.0, %v387
    %v389 = vpop.f32.mrf.mxu0
    %390 = vdwg.mxu0
    %v391 = vsel %vm118, %v388, -1e+30
    %v392 = vsel %vm123, %v391, -inf
    %393 = vmax.xlane.f32.xlu0 %v392
    %v394 = vpop.xlane.xlu0 %393
    %v395 = vsub.f32 %v391, %v394
    %v396 = vmul.f32 %v395, 1.442695
    %v397 = vpow.pop %v396
    %v398 = vsel %vm123, %v397, 0.0
    %399 = vadd.xlane.f32.xlu0 %v398
    %v400 = vpop.xlane.xlu0 %399
    %v401 = vpack.c.bf16 %v397, %v397
    %402 = vrot.lane.b32.xlu0 %v368, 64
    %v403 = vpop.permute.xlu0 %402
    %v405 = vsel %vm123, %v401, 0
    %v408 = vsel %vm159, %v403, 0
    %410 = vmatpush.bf16.msra.mxu0 0
    %411 = vmatpush.bf16.msra.mxu0 0
    %412 = vmatpush.bf16.msra.mxu0 0
    %413 = vmatpush.bf16.msra.mxu0 0
    %414 = vmatpush.bf16.msra.mxu0 0
    %415 = vmatpush.bf16.msra.mxu0 0
    %416 = vmatpush.bf16.msra.mxu0 0
    %417 = vmatpush.bf16.msra.mxu0 %v408
    %418 = vmatmul.bf16.gmra.mxu0 %v405
    %v419 = vpop.f32.mrf.mxu0
    %v420 = vadd.f32 0.0, %v419
    %v421 = vpop.f32.mrf.mxu0
    %422 = vdwg.mxu0
    %v423 = vrcp.pop %v400
    %v424 = vmul.f32 %v420, %v423
    %425 = vst.msk [vmem:[#allocation2 + $0x8] sm:$0xff] %vm123, %v424
    %426 = vrot.lane.b32.xlu0 %v368, 88
    %v427 = vpop.permute.xlu0 %426
    %428 = vrot.lane.b32.xlu0 %v368, 120
    %v429 = vpop.permute.xlu0 %428
    %v431 = vsel %vm123, %v427, 0
    %v434 = vsel %vm123, %v429, 0
    %436 = vmatpush.bf16.xpose.msra.mxu0 0
    %437 = vmatpush.bf16.xpose.msra.mxu0 0
    %438 = vmatpush.bf16.xpose.msra.mxu0 0
    %439 = vmatpush.bf16.xpose.msra.mxu0 0
    %440 = vmatpush.bf16.xpose.msra.mxu0 0
    %441 = vmatpush.bf16.xpose.msra.mxu0 0
    %442 = vmatpush.bf16.xpose.msra.mxu0 0
    %443 = vmatpush.bf16.xpose.msra.mxu0 %v434
    %444 = vmatmul.bf16.gmra.mxu0 %v431
    %v445 = vpop.f32.mrf.mxu0
    %v446 = vadd.f32 0.0, %v445
    %v447 = vpop.f32.mrf.mxu0
    %448 = vdwg.mxu0
    %v449 = vsel %vm118, %v446, -1e+30
    %v450 = vsel %vm123, %v449, -inf
    %451 = vmax.xlane.f32.xlu0 %v450
    %v452 = vpop.xlane.xlu0 %451
    %v453 = vsub.f32 %v449, %v452
    %v454 = vmul.f32 %v453, 1.442695
    %v455 = vpow.pop %v454
    %v456 = vsel %vm123, %v455, 0.0
    %457 = vadd.xlane.f32.xlu0 %v456
    %v458 = vpop.xlane.xlu0 %457
    %v459 = vpack.c.bf16 %v455, %v455
    %460 = vrot.lane.b32.xlu0 %v368, 56
    %v461 = vpop.permute.xlu0 %460
    %v463 = vsel %vm123, %v459, 0
    %v466 = vsel %vm159, %v461, 0
    %468 = vmatpush.bf16.msra.mxu0 0
    %469 = vmatpush.bf16.msra.mxu0 0
    %470 = vmatpush.bf16.msra.mxu0 0
    %471 = vmatpush.bf16.msra.mxu0 0
    %472 = vmatpush.bf16.msra.mxu0 0
    %473 = vmatpush.bf16.msra.mxu0 0
    %474 = vmatpush.bf16.msra.mxu0 0
    %475 = vmatpush.bf16.msra.mxu0 %v466
    %476 = vmatmul.bf16.gmra.mxu0 %v463
    %v477 = vpop.f32.mrf.mxu0
    %v478 = vadd.f32 0.0, %v477
    %v479 = vpop.f32.mrf.mxu0
    %480 = vdwg.mxu0
    %v481 = vrcp.pop %v458
    %v482 = vmul.f32 %v478, %v481
    %484 = vrot.lane.b32.xlu0 %v482, 8
    %v485 = vpop.permute.xlu0 %484
    %487 = vst.msk [vmem:[#allocation2 + $0x8] sm:$0xff] %vm240, %v485
    %488 = vrot.lane.b32.xlu0 %v368, 80
    %v489 = vpop.permute.xlu0 %488
    %490 = vrot.lane.b32.xlu0 %v368, 112
    %v491 = vpop.permute.xlu0 %490
    %v493 = vsel %vm123, %v489, 0
    %v496 = vsel %vm123, %v491, 0
    %498 = vmatpush.bf16.xpose.msra.mxu0 0
    %499 = vmatpush.bf16.xpose.msra.mxu0 0
    %500 = vmatpush.bf16.xpose.msra.mxu0 0
    %501 = vmatpush.bf16.xpose.msra.mxu0 0
    %502 = vmatpush.bf16.xpose.msra.mxu0 0
    %503 = vmatpush.bf16.xpose.msra.mxu0 0
    %504 = vmatpush.bf16.xpose.msra.mxu0 0
    %505 = vmatpush.bf16.xpose.msra.mxu0 %v496
    %506 = vmatmul.bf16.gmra.mxu0 %v493
    %v507 = vpop.f32.mrf.mxu0
    %v508 = vadd.f32 0.0, %v507
    %v509 = vpop.f32.mrf.mxu0
    %510 = vdwg.mxu0
    %v511 = vsel %vm118, %v508, -1e+30
    %v512 = vsel %vm123, %v511, -inf
    %513 = vmax.xlane.f32.xlu0 %v512
    %v514 = vpop.xlane.xlu0 %513
    %v515 = vsub.f32 %v511, %v514
    %v516 = vmul.f32 %v515, 1.442695
    %v517 = vpow.pop %v516
    %v518 = vsel %vm123, %v517, 0.0
    %519 = vadd.xlane.f32.xlu0 %v518
    %v520 = vpop.xlane.xlu0 %519
    %v521 = vpack.c.bf16 %v517, %v517
    %522 = vrot.lane.b32.xlu0 %v368, 48
    %v523 = vpop.permute.xlu0 %522
    %v525 = vsel %vm123, %v521, 0
    %v528 = vsel %vm159, %v523, 0
    %530 = vmatpush.bf16.msra.mxu0 0
    %531 = vmatpush.bf16.msra.mxu0 0
    %532 = vmatpush.bf16.msra.mxu0 0
    %533 = vmatpush.bf16.msra.mxu0 0
    %534 = vmatpush.bf16.msra.mxu0 0
    %535 = vmatpush.bf16.msra.mxu0 0
    %536 = vmatpush.bf16.msra.mxu0 0
    %537 = vmatpush.bf16.msra.mxu0 %v528
    %538 = vmatmul.bf16.gmra.mxu0 %v525
    %v539 = vpop.f32.mrf.mxu0
    %v540 = vadd.f32 0.0, %v539
    %v541 = vpop.f32.mrf.mxu0
    %542 = vdwg.mxu0
    %v543 = vrcp.pop %v520
    %v544 = vmul.f32 %v540, %v543
    %546 = vrot.lane.b32.xlu0 %v544, 16
    %v547 = vpop.permute.xlu0 %546
    %549 = vst.msk [vmem:[#allocation2 + $0x8] sm:$0xff] %vm303, %v547
    %550 = vrot.lane.b32.xlu0 %v368, 72
    %v551 = vpop.permute.xlu0 %550
    %552 = vrot.lane.b32.xlu0 %v368, 104
    %v553 = vpop.permute.xlu0 %552
    %v555 = vsel %vm123, %v551, 0
    %v558 = vsel %vm123, %v553, 0
    %560 = vmatpush.bf16.xpose.msra.mxu0 0
    %561 = vmatpush.bf16.xpose.msra.mxu0 0
    %562 = vmatpush.bf16.xpose.msra.mxu0 0
    %563 = vmatpush.bf16.xpose.msra.mxu0 0
    %564 = vmatpush.bf16.xpose.msra.mxu0 0
    %565 = vmatpush.bf16.xpose.msra.mxu0 0
    %566 = vmatpush.bf16.xpose.msra.mxu0 0
    %567 = vmatpush.bf16.xpose.msra.mxu0 %v558
    %568 = vmatmul.bf16.gmra.mxu0 %v555
    %v569 = vpop.f32.mrf.mxu0
    %v570 = vadd.f32 0.0, %v569
    %v571 = vpop.f32.mrf.mxu0
    %572 = vdwg.mxu0
    %v573 = vsel %vm118, %v570, -1e+30
    %v574 = vsel %vm123, %v573, -inf
    %575 = vmax.xlane.f32.xlu0 %v574
    %v576 = vpop.xlane.xlu0 %575
    %v577 = vsub.f32 %v573, %v576
    %v578 = vmul.f32 %v577, 1.442695
    %v579 = vpow.pop %v578
    %v580 = vsel %vm123, %v579, 0.0
    %581 = vadd.xlane.f32.xlu0 %v580
    %v582 = vpop.xlane.xlu0 %581
    %v583 = vpack.c.bf16 %v579, %v579
    %584 = vrot.lane.b32.xlu0 %v368, 40
    %v585 = vpop.permute.xlu0 %584
    %v587 = vsel %vm123, %v583, 0
    %v590 = vsel %vm159, %v585, 0
    %592 = vmatpush.bf16.msra.mxu0 0
    %593 = vmatpush.bf16.msra.mxu0 0
    %594 = vmatpush.bf16.msra.mxu0 0
    %595 = vmatpush.bf16.msra.mxu0 0
    %596 = vmatpush.bf16.msra.mxu0 0
    %597 = vmatpush.bf16.msra.mxu0 0
    %598 = vmatpush.bf16.msra.mxu0 0
    %599 = vmatpush.bf16.msra.mxu0 %v590
    %600 = vmatmul.bf16.gmra.mxu0 %v587
    %v601 = vpop.f32.mrf.mxu0
    %v602 = vadd.f32 0.0, %v601
    %v603 = vpop.f32.mrf.mxu0
    %604 = vdwg.mxu0
    %v605 = vrcp.pop %v582
    %v606 = vmul.f32 %v602, %v605
    %608 = vrot.lane.b32.xlu0 %v606, 24
    %v609 = vpop.permute.xlu0 %608
    %611 = vst.msk [vmem:[#allocation2 + $0x8] sm:$0xff] %vm366, %v609
    %v612 = vld [vmem:[#allocation2] sm:$0xff]
    %v613 = vld [vmem:[#allocation2 + $0x8] sm:$0xff]
    %v614 = vpack.c.bf16 %v613, %v612
    %v615 = vld [vmem:[#allocation8] sm:$0xf]
    %v616 = vld [vmem:[#allocation8 + $0x4] sm:$0xf]
    %v617 = vld [vmem:[#allocation8 + $0x8] sm:$0xf]
    %v618 = vld [vmem:[#allocation8 + $0xc] sm:$0xf]
    %v619 = vld [vmem:[%s4] sm:$0x1]
    %v621 = vperm.slane %v619, 0
    %v627 = vunpack.c.l.b16 %v615
    %v628 = vunpack.c.l.b16 %v616
    %v629 = vunpack.c.l.b16 %v617
    %v630 = vunpack.c.l.b16 %v618
    %v631 = vpack.c.b16 %v628, %v627
    %v632 = vpack.c.b16 %v630, %v629
    %v636 = vsel %vm96, %v614, 0
    %638 = vmatpush.bf16.msra.mxu0 0
    %639 = vmatpush.bf16.msra.mxu0 0
    %640 = vmatpush.bf16.msra.mxu0 0
    %641 = vmatpush.bf16.msra.mxu0 0
    %642 = vmatpush.bf16.msra.mxu0 0
    %643 = vmatpush.bf16.msra.mxu0 0
    %644 = vmatpush.bf16.msra.mxu0 %v632
    %645 = vmatpush.bf16.msra.mxu0 %v631
    %646 = vmatmul.bf16.gmra.mxu0 %v636
    %v647 = vpop.f32.mrf.mxu0
    %v648 = vadd.f32 %v621, %v647
    %v649 = vpop.f32.mrf.mxu0
    %v650 = vadd.f32 %v621, %v649
    %651 = vdwg.mxu0
    %652 = vst.msk [vmem:[#allocation9] sm:$0xff] %vm96, %v648
    %653 = vst.msk [vmem:[#allocation9 + $0x8] sm:$0xff] %vm96, %v650
    // Predicated region
    $region34: #{tpu_custom_call.1} parent=1 // pred_check
      _
    $region35: #{tpu_custom_call.1} parent=1 // pred_check_branch
      %655 = sbr.rel (0) target = $region37
    $region36: #{tpu_custom_call.1} parent=1 // pred_region
      %657 = vsyncadd [#allocation5], 0
      %s658 = sshll.u32 [#allocation9], 4
      %s659 = int_to_ptr.vmem [resolvable:$true] %s658
      %s660 = sshll.u32 %s5, 4
      %s661 = int_to_ptr.hbm [resolvable:$true] %s660
      %666 = dma.vmem_to_hbm [thread:$0]  %s659, 256, %s661, [#allocation5], 128, 128, 8
    $region37: #{tpu_custom_call.1} parent=1 // pred_fallthru
      _
    // Predicated region
    $region38: #{tpu_custom_call.1} parent=1 // pred_check
      _
    $region39: #{tpu_custom_call.1} parent=1 // pred_check_branch
      %668 = sbr.rel (0) target = $region41
    $region40: #{tpu_custom_call.1} parent=1 // pred_region
      %670 = dma.done [#allocation5], 256
    $region41: #{tpu_custom_call.1} parent=1 // pred_fallthru
      _
    %671 = vsyncpa [#allocation4], 1
    %672 = vsyncpa [#allocation7], 1
    %673 = vsyncpa [#allocation5], 1

</llo_original>
